<compile_context>
chip_gen: v5e
topology: v5e:2x2
jax: 0.10.0
libtpu: 0.0.40
codegen_flags: <defaults>
</compile_context>

<pallas_src>
import functools

import jax
import jax.numpy as jnp
from jax.experimental import pallas as pl
from jax.experimental.pallas import tpu as pltpu


def _default_use_mxu():
    """MXU conv offload everywhere except v5e (HBM-bound there)."""
    try:
        kind = jax.devices()[0].device_kind.lower()
    except Exception:
        return True
    return not ("v5e" in kind or "v5 lite" in kind or "v5lite" in kind)


def _attention_gate_kernel(g_ref, x_ref, w_ref, bp_ref, o_ref, *,
                           cg, cx, use_mxu, approx_sigmoid):
    # g_ref: (Nb, Cg, T)   x_ref: (Nb, Cx, T)   -- spatial on lanes
    # w_ref: (Ci, Cg+Cx+2) packed f32: [W_g | W_x | (b_g+b_x) | w_psi]
    # bp_ref: (1,) SMEM scalar, folded psi bias
    # o_ref: (Nb, Cx, T)
    nb = g_ref.shape[0]

    w = w_ref[...]                                   # (Ci, Cg+Cx+2) f32
    b = w[:, cg + cx:cg + cx + 1]                    # (Ci, 1) folded bias
    wp = w[:, cg + cx + 1:cg + cx + 2]               # (Ci, 1) psi weights
    bp = bp_ref[0]

    if use_mxu:
        wg_b = w[:, :cg].astype(jnp.bfloat16)
        wx_b = w[:, cg:cg + cx].astype(jnp.bfloat16)

    for n in range(nb):
        g = g_ref[n]                                 # (Cg, T)
        x = x_ref[n]                                 # (Cx, T)

        if use_mxu:
            # Offload the two 1x1 convs to the (otherwise idle) MXU.
            pre = (jnp.dot(wg_b, g.astype(jnp.bfloat16),
                           preferred_element_type=jnp.float32)
                   + jnp.dot(wx_b, x.astype(jnp.bfloat16),
                             preferred_element_type=jnp.float32)
                   + b)                              # (Ci, T)
        else:
            # VPU broadcast-FMA path (v5e): seed the accumulator with the
            # bias so no separate add passes are needed.
            gf = g.astype(jnp.float32)
            xf = x.astype(jnp.float32)
            acc = b + w[:, 0:1] * gf[0:1, :]
            for c in range(1, cg):
                acc = acc + w[:, c:c + 1] * gf[c:c + 1, :]
            for c in range(cx):
                acc = acc + w[:, cg + c:cg + c + 1] * xf[c:c + 1, :]
            pre = acc                                # (Ci, T)

        p = jnp.maximum(pre, 0.0)                    # ReLU

        # psi = sigmoid(w_psi . p + b_psi): sublane reduce over Ci -> (1, T)
        s = jnp.sum(wp * p, axis=0, keepdims=True) + bp
        psi = pl.reciprocal(1.0 + jnp.exp(-s), approx=approx_sigmoid)

        o_ref[n] = (x.astype(jnp.float32) * psi).astype(o_ref.dtype)


def fold_conv_bn(w, b, gamma, beta, mean, var, eps=1e-5):
    """Fold eval-mode BatchNorm into a 1x1 conv. w: (Cout, Cin), b: (Cout,)."""
    scale = gamma / jnp.sqrt(var + eps)
    w_eff = w * scale[:, None]
    b_eff = (b - mean) * scale + beta
    return w_eff, b_eff


def attention_block(g, x, params, *, pixels_per_step=32768,
                    input_dtype=jnp.bfloat16, use_mxu=None):
    """g: (N, Cg, H, W), x: (N, Cx, H, W) in NCHW; returns (N, Cx, H, W).

    input_dtype=bf16 halves HBM traffic (accumulation stays f32 in-kernel);
    pass input_dtype=None to keep the incoming dtype bit-exactly.
    """
    N, Cg, H, W = g.shape
    _, Cx, _, _ = x.shape

    wg, bg = fold_conv_bn(*params["W_g"])          # (Ci, Cg), (Ci,)
    wx, bx = fold_conv_bn(*params["W_x"])          # (Ci, Cx), (Ci,)
    wp, bp = fold_conv_bn(*params["psi"])          # (1, Ci),  (1,)
    Ci = wg.shape[0]

    if use_mxu is None:
        use_mxu = _default_use_mxu()

    HW = H * W
    g3 = g.reshape(N, Cg, HW)                      # free reshape (no transpose)
    x3 = x.reshape(N, Cx, HW)
    if input_dtype is not None:
        g3 = g3.astype(input_dtype)                # fuses with producer under jit
        x3 = x3.astype(input_dtype)
    out_dtype = x3.dtype

    # --- choose pixels-per-step, clamped by a rough VMEM footprint estimate
    in_b = jnp.dtype(g3.dtype).itemsize
    out_b = jnp.dtype(out_dtype).itemsize
    bytes_per_pixel = 2 * ((Cg + Cx) * in_b + Cx * out_b) + 3 * Ci * 4
    budget = 12 * 1024 * 1024                      # well under any scoped default
    target = max(128, min(int(pixels_per_step), budget // bytes_per_pixel))

    if HW > target:
        T = (target // 128) * 128                  # lane-dense tile; ragged tail masked
        Nb = 1
    else:
        T = HW                                     # full spatial axis in one block
        # Fold batch images into a block for tiny feature maps, but keep
        # >=2 grid steps when possible so megacore (v7x) can shard.
        max_fold = max(1, min(N, target // max(HW, 1)))
        Nb = 1
        for d in range(max_fold, 0, -1):
            if N % d == 0 and (N < 2 or N // d >= 2):
                Nb = d
                break

    num_t = pl.cdiv(HW, T)

    # Packed resident operand: [W_g | W_x | b_g+b_x | w_psi]  -> (Ci, Cg+Cx+2)
    w_all = jnp.concatenate(
        [wg.astype(jnp.float32),
         wx.astype(jnp.float32),
         (bg + bx).reshape(Ci, 1).astype(jnp.float32),
         wp.reshape(Ci, 1).astype(jnp.float32)], axis=1)
    bp_s = bp.reshape(1).astype(jnp.float32)

    kernel = functools.partial(
        _attention_gate_kernel, cg=Cg, cx=Cx, use_mxu=use_mxu,
        approx_sigmoid=(out_dtype == jnp.bfloat16))

    out3 = pl.pallas_call(
        kernel,
        out_shape=jax.ShapeDtypeStruct((N, Cx, HW), out_dtype),
        grid_spec=pltpu.PrefetchScalarGridSpec(
            num_scalar_prefetch=0,
            grid=(N // Nb, num_t),
            in_specs=[
                pl.BlockSpec((Nb, Cg, T), lambda n, i: (n, 0, i)),     # g tile
                pl.BlockSpec((Nb, Cx, T), lambda n, i: (n, 0, i)),     # x tile
                pl.BlockSpec((Ci, Cg + Cx + 2), lambda n, i: (0, 0)),  # packed W
                pl.BlockSpec(memory_space=pltpu.MemorySpace.SMEM),     # b_psi
            ],
            out_specs=pl.BlockSpec((Nb, Cx, T), lambda n, i: (n, 0, i)),
        ),
        compiler_params=pltpu.CompilerParams(
            dimension_semantics=("parallel", "parallel")),
    )(g3, x3, w_all, bp_s)

    return out3.reshape(N, Cx, H, W)


def reference_attention_block(g, x, params, eps=1e-5):
    """Pure-JAX reference (NCHW, eval-mode BN)."""
    def conv_bn(inp, w, b, gamma, beta, mean, var):
        y = jnp.einsum("nchw,oc->nohw", inp, w) + b[None, :, None, None]
        scale = gamma / jnp.sqrt(var + eps)
        return (y - mean[None, :, None, None]) * scale[None, :, None, None] \
            + beta[None, :, None, None]

    g1 = conv_bn(g, *params["W_g"])
    x1 = conv_bn(x, *params["W_x"])
    p = jnp.maximum(g1 + x1, 0.0)
    psi = conv_bn(p, *params["psi"])
    psi = 1.0 / (1.0 + jnp.exp(-psi))
    return x * psi


def make_params(key, g_channels, x_channels, inter_channels):
    ks = jax.random.split(key, 12)

    def branch(k0, k1, k2, k3, cin, cout):
        w = jax.random.normal(k0, (cout, cin), jnp.float32) * 0.2
        b = jax.random.normal(k1, (cout,), jnp.float32) * 0.1
        gamma = 1.0 + 0.1 * jax.random.normal(k2, (cout,), jnp.float32)
        beta = 0.1 * jax.random.normal(k3, (cout,), jnp.float32)
        mean = jnp.zeros((cout,), jnp.float32)
        var = jnp.ones((cout,), jnp.float32)
        return (w, b, gamma, beta, mean, var)

    return {
        "W_g": branch(ks[0], ks[1], ks[2], ks[3], g_channels, inter_channels),
        "W_x": branch(ks[4], ks[5], ks[6], ks[7], x_channels, inter_channels),
        "psi": branch(ks[8], ks[9], ks[10], ks[11], inter_channels, 1),
    }


if __name__ == "__main__":
    key = jax.random.PRNGKey(0)
    kg, kx, kp, kg2, kx2 = jax.random.split(key, 5)

    N, H, W = 2, 16, 16
    g_channels, x_channels, inter_channels = 6, 4, 8

    g = jax.random.normal(kg, (N, g_channels, H, W), jnp.float32)
    x = jax.random.normal(kx, (N, x_channels, H, W), jnp.float32)
    params = make_params(kp, g_channels, x_channels, inter_channels)
    ref = reference_attention_block(g, x, params)

    # 1) Exact f32 / VPU path -- tight check against the reference.
    out_f32 = attention_block(g, x, params, input_dtype=None, use_mxu=False)
    out_f32 = jax.block_until_ready(out_f32)
    assert out_f32.shape == (N, x_channels, H, W)
    assert jnp.allclose(out_f32, ref, atol=1e-5, rtol=1e-5), "f32 mismatch"

    # 2) Default perf path: bf16 activations + generation-aware conv dispatch.
    out = attention_block(g, x, params)
    out = jax.block_until_ready(out)
    assert out.shape == (N, x_channels, H, W)
    assert jnp.allclose(out.astype(jnp.float32), ref, atol=5e-2, rtol=5e-2), \
        "bf16 mismatch"

    # 3) Batch-folded blocks (small feature map, N=4 -> Nb=2), exact path.
    g4 = jax.random.normal(kg2, (4, g_channels, H, W), jnp.float32)
    x4 = jax.random.normal(kx2, (4, x_channels, H, W), jnp.float32)
    out4 = attention_block(g4, x4, params, input_dtype=None, use_mxu=False)
    out4 = jax.block_until_ready(out4)
    ref4 = reference_attention_block(g4, x4, params)
    assert jnp.allclose(out4, ref4, atol=1e-5, rtol=1e-5), "batch-fold mismatch"

    print("KERNEL_OK")
</pallas_src>

<mosaic_0001>
module attributes {stable_mosaic.version = 11 : i64} {
  func.func @_attention_gate_kernel(%arg0: i32, %arg1: i32, %arg2: memref<1x6x256xf32, #tpu.memory_space<vmem>>, %arg3: memref<1x4x256xf32, #tpu.memory_space<vmem>>, %arg4: memref<8x12xf32, #tpu.memory_space<vmem>>, %arg5: memref<1xf32, #tpu.memory_space<smem>>, %arg6: memref<1x4x256xf32, #tpu.memory_space<vmem>>) attributes {dimension_semantics = [#tpu.dimension_semantics<parallel>, #tpu.dimension_semantics<parallel>], iteration_bounds = array<i64: 2, 1>, scalar_prefetch = 0 : i64, scratch_operands = 0 : i64, tpu.core_type = #tpu.core_type<tc>, window_params = [{transform_indices = @transform_0, window_bounds = array<i64: 1, 6, 256>}, {transform_indices = @transform_1, window_bounds = array<i64: 1, 4, 256>}, {pipeline_mode = #tpu.pipeline_mode<synchronous>, transform_indices = @transform_2, window_bounds = array<i64: 8, 12>}, {transform_indices = @transform_3, window_bounds = array<i64: 1>}, {transform_indices = @transform_4, window_bounds = array<i64: 1, 4, 256>}]} {
    %c0 = arith.constant 0 : index
    %c0_0 = arith.constant 0 : index
    %0 = vector.load %arg4[%c0, %c0_0] : memref<8x12xf32, #tpu.memory_space<vmem>>, vector<8x12xf32>
    %1 = vector.extract_strided_slice %0 {offsets = [0, 10], sizes = [8, 1], strides = [1, 1]} : vector<8x12xf32> to vector<8x1xf32>
    %2 = vector.extract_strided_slice %0 {offsets = [0, 11], sizes = [8, 1], strides = [1, 1]} : vector<8x12xf32> to vector<8x1xf32>
    %c0_1 = arith.constant 0 : index
    %3 = memref.load %arg5[%c0_1] : memref<1xf32, #tpu.memory_space<smem>>
    %c0_2 = arith.constant 0 : index
    %c0_3 = arith.constant 0 : index
    %c0_4 = arith.constant 0 : index
    %4 = vector.load %arg2[%c0_2, %c0_3, %c0_4] : memref<1x6x256xf32, #tpu.memory_space<vmem>>, vector<1x6x256xf32>
    %5 = vector.shape_cast %4 : vector<1x6x256xf32> to vector<6x256xf32>
    %c0_5 = arith.constant 0 : index
    %c0_6 = arith.constant 0 : index
    %c0_7 = arith.constant 0 : index
    %6 = vector.load %arg3[%c0_5, %c0_6, %c0_7] : memref<1x4x256xf32, #tpu.memory_space<vmem>>, vector<1x4x256xf32>
    %7 = vector.shape_cast %6 : vector<1x4x256xf32> to vector<4x256xf32>
    %8 = vector.extract_strided_slice %0 {offsets = [0, 0], sizes = [8, 1], strides = [1, 1]} : vector<8x12xf32> to vector<8x1xf32>
    %9 = vector.extract_strided_slice %5 {offsets = [0, 0], sizes = [1, 256], strides = [1, 1]} : vector<6x256xf32> to vector<1x256xf32>
    %10 = vector.broadcast %8 : vector<8x1xf32> to vector<8x256xf32>
    %11 = vector.broadcast %9 : vector<1x256xf32> to vector<8x256xf32>
    %12 = arith.mulf %10, %11 : vector<8x256xf32>
    %13 = vector.broadcast %1 : vector<8x1xf32> to vector<8x256xf32>
    %14 = arith.addf %13, %12 : vector<8x256xf32>
    %15 = vector.extract_strided_slice %0 {offsets = [0, 1], sizes = [8, 1], strides = [1, 1]} : vector<8x12xf32> to vector<8x1xf32>
    %16 = vector.extract_strided_slice %5 {offsets = [1, 0], sizes = [1, 256], strides = [1, 1]} : vector<6x256xf32> to vector<1x256xf32>
    %17 = vector.broadcast %15 : vector<8x1xf32> to vector<8x256xf32>
    %18 = vector.broadcast %16 : vector<1x256xf32> to vector<8x256xf32>
    %19 = arith.mulf %17, %18 : vector<8x256xf32>
    %20 = arith.addf %14, %19 : vector<8x256xf32>
    %21 = vector.extract_strided_slice %0 {offsets = [0, 2], sizes = [8, 1], strides = [1, 1]} : vector<8x12xf32> to vector<8x1xf32>
    %22 = vector.extract_strided_slice %5 {offsets = [2, 0], sizes = [1, 256], strides = [1, 1]} : vector<6x256xf32> to vector<1x256xf32>
    %23 = vector.broadcast %21 : vector<8x1xf32> to vector<8x256xf32>
    %24 = vector.broadcast %22 : vector<1x256xf32> to vector<8x256xf32>
    %25 = arith.mulf %23, %24 : vector<8x256xf32>
    %26 = arith.addf %20, %25 : vector<8x256xf32>
    %27 = vector.extract_strided_slice %0 {offsets = [0, 3], sizes = [8, 1], strides = [1, 1]} : vector<8x12xf32> to vector<8x1xf32>
    %28 = vector.extract_strided_slice %5 {offsets = [3, 0], sizes = [1, 256], strides = [1, 1]} : vector<6x256xf32> to vector<1x256xf32>
    %29 = vector.broadcast %27 : vector<8x1xf32> to vector<8x256xf32>
    %30 = vector.broadcast %28 : vector<1x256xf32> to vector<8x256xf32>
    %31 = arith.mulf %29, %30 : vector<8x256xf32>
    %32 = arith.addf %26, %31 : vector<8x256xf32>
    %33 = vector.extract_strided_slice %0 {offsets = [0, 4], sizes = [8, 1], strides = [1, 1]} : vector<8x12xf32> to vector<8x1xf32>
    %34 = vector.extract_strided_slice %5 {offsets = [4, 0], sizes = [1, 256], strides = [1, 1]} : vector<6x256xf32> to vector<1x256xf32>
    %35 = vector.broadcast %33 : vector<8x1xf32> to vector<8x256xf32>
    %36 = vector.broadcast %34 : vector<1x256xf32> to vector<8x256xf32>
    %37 = arith.mulf %35, %36 : vector<8x256xf32>
    %38 = arith.addf %32, %37 : vector<8x256xf32>
    %39 = vector.extract_strided_slice %0 {offsets = [0, 5], sizes = [8, 1], strides = [1, 1]} : vector<8x12xf32> to vector<8x1xf32>
    %40 = vector.extract_strided_slice %5 {offsets = [5, 0], sizes = [1, 256], strides = [1, 1]} : vector<6x256xf32> to vector<1x256xf32>
    %41 = vector.broadcast %39 : vector<8x1xf32> to vector<8x256xf32>
    %42 = vector.broadcast %40 : vector<1x256xf32> to vector<8x256xf32>
    %43 = arith.mulf %41, %42 : vector<8x256xf32>
    %44 = arith.addf %38, %43 : vector<8x256xf32>
    %45 = vector.extract_strided_slice %0 {offsets = [0, 6], sizes = [8, 1], strides = [1, 1]} : vector<8x12xf32> to vector<8x1xf32>
    %46 = vector.extract_strided_slice %7 {offsets = [0, 0], sizes = [1, 256], strides = [1, 1]} : vector<4x256xf32> to vector<1x256xf32>
    %47 = vector.broadcast %45 : vector<8x1xf32> to vector<8x256xf32>
    %48 = vector.broadcast %46 : vector<1x256xf32> to vector<8x256xf32>
    %49 = arith.mulf %47, %48 : vector<8x256xf32>
    %50 = arith.addf %44, %49 : vector<8x256xf32>
    %51 = vector.extract_strided_slice %0 {offsets = [0, 7], sizes = [8, 1], strides = [1, 1]} : vector<8x12xf32> to vector<8x1xf32>
    %52 = vector.extract_strided_slice %7 {offsets = [1, 0], sizes = [1, 256], strides = [1, 1]} : vector<4x256xf32> to vector<1x256xf32>
    %53 = vector.broadcast %51 : vector<8x1xf32> to vector<8x256xf32>
    %54 = vector.broadcast %52 : vector<1x256xf32> to vector<8x256xf32>
    %55 = arith.mulf %53, %54 : vector<8x256xf32>
    %56 = arith.addf %50, %55 : vector<8x256xf32>
    %57 = vector.extract_strided_slice %0 {offsets = [0, 8], sizes = [8, 1], strides = [1, 1]} : vector<8x12xf32> to vector<8x1xf32>
    %58 = vector.extract_strided_slice %7 {offsets = [2, 0], sizes = [1, 256], strides = [1, 1]} : vector<4x256xf32> to vector<1x256xf32>
    %59 = vector.broadcast %57 : vector<8x1xf32> to vector<8x256xf32>
    %60 = vector.broadcast %58 : vector<1x256xf32> to vector<8x256xf32>
    %61 = arith.mulf %59, %60 : vector<8x256xf32>
    %62 = arith.addf %56, %61 : vector<8x256xf32>
    %63 = vector.extract_strided_slice %0 {offsets = [0, 9], sizes = [8, 1], strides = [1, 1]} : vector<8x12xf32> to vector<8x1xf32>
    %64 = vector.extract_strided_slice %7 {offsets = [3, 0], sizes = [1, 256], strides = [1, 1]} : vector<4x256xf32> to vector<1x256xf32>
    %65 = vector.broadcast %63 : vector<8x1xf32> to vector<8x256xf32>
    %66 = vector.broadcast %64 : vector<1x256xf32> to vector<8x256xf32>
    %67 = arith.mulf %65, %66 : vector<8x256xf32>
    %68 = arith.addf %62, %67 : vector<8x256xf32>
    %cst = arith.constant 0.000000e+00 : f32
    %69 = vector.broadcast %cst : f32 to vector<8x256xf32>
    %70 = arith.maximumf %68, %69 : vector<8x256xf32>
    %71 = vector.broadcast %2 : vector<8x1xf32> to vector<8x256xf32>
    %72 = arith.mulf %71, %70 : vector<8x256xf32>
    %cst_8 = arith.constant dense<0.000000e+00> : vector<256xf32>
    %73 = vector.multi_reduction <add>, %72, %cst_8 [0] : vector<8x256xf32> to vector<256xf32>
    %74 = vector.shape_cast %73 : vector<256xf32> to vector<1x256xf32>
    %75 = vector.broadcast %3 : f32 to vector<1x256xf32>
    %76 = arith.addf %74, %75 : vector<1x256xf32>
    %cst_9 = arith.constant 0.000000e+00 : f32
    %77 = vector.broadcast %cst_9 : f32 to vector<1x256xf32>
    %78 = arith.subf %77, %76 : vector<1x256xf32>
    %79 = math.exp %78 : vector<1x256xf32>
    %cst_10 = arith.constant 1.000000e+00 : f32
    %80 = vector.broadcast %cst_10 : f32 to vector<1x256xf32>
    %81 = arith.addf %80, %79 : vector<1x256xf32>
    %82 = tpu.reciprocal %81 : vector<1x256xf32> -> vector<1x256xf32>
    %83 = vector.broadcast %82 : vector<1x256xf32> to vector<4x256xf32>
    %84 = arith.mulf %7, %83 : vector<4x256xf32>
    %c0_11 = arith.constant 0 : index
    %c0_12 = arith.constant 0 : index
    %c0_13 = arith.constant 0 : index
    %85 = vector.load %arg6[%c0_11, %c0_12, %c0_13] : memref<1x4x256xf32, #tpu.memory_space<vmem>>, vector<1x4x256xf32>
    %86 = vector.shape_cast %85 : vector<1x4x256xf32> to vector<4x256xf32>
    %87 = vector.shape_cast %84 : vector<4x256xf32> to vector<1x4x256xf32>
    tpu.vector_store %arg6[%c0_11, %c0_12, %c0_13], %87 {strides = array<i32>} : memref<1x4x256xf32, #tpu.memory_space<vmem>>, vector<1x4x256xf32>,
    return
  }
  func.func @transform_0(%arg0: i32, %arg1: i32) -> (i32, i32, i32) {
    %c0_i32 = arith.constant 0 : i32
    %c0_i32_0 = arith.constant 0 : i32
    return %arg0, %c0_i32, %arg1 : i32, i32, i32
  }
  func.func @transform_1(%arg0: i32, %arg1: i32) -> (i32, i32, i32) {
    %c0_i32 = arith.constant 0 : i32
    %c0_i32_0 = arith.constant 0 : i32
    return %arg0, %c0_i32, %arg1 : i32, i32, i32
  }
  func.func @transform_2(%arg0: i32, %arg1: i32) -> (i32, i32) {
    %c0_i32 = arith.constant 0 : i32
    %c0_i32_0 = arith.constant 0 : i32
    %c0_i32_1 = arith.constant 0 : i32
    return %c0_i32, %c0_i32_0 : i32, i32
  }
  func.func @transform_3(%arg0: i32, %arg1: i32) -> i32 {
    %c0_i32 = arith.constant 0 : i32
    %c0_i32_0 = arith.constant 0 : i32
    return %c0_i32 : i32
  }
  func.func @transform_4(%arg0: i32, %arg1: i32) -> (i32, i32, i32) {
    %c0_i32 = arith.constant 0 : i32
    %c0_i32_0 = arith.constant 0 : i32
    return %arg0, %c0_i32, %arg1 : i32, i32, i32
  }
}

</mosaic_0001>

<llo_original>
// kernel: tpu_custom_call.1
$region0: #{tpu_custom_call.1}
  #allocation0 [shape = 'u32[]', space=smem, size = 0x4, offset = 0x4, fixed_abs, tag = 'smem constant byte address 0x4 - core index']
  #allocation1 [shape = 'u32[72,128]{1,0:T(1,128)}', space=vmem, size = 0x9000, scoped, tag = 'internal scratch']
  #allocation2 [shape = 'f32[1]{0:T(128)S(6)}', space=smem, size = 0x200, scoped, tag = 'scoped memory for tpu_custom_call.1']
  %s0 = inlined_call_operand.vmem [shape: f32[2,6,256], index: 0, kind: input, shape index: {}]
  %s1 = inlined_call_operand.vmem [shape: f32[2,4,256], index: 1, kind: input, shape index: {}]
  %s2 = inlined_call_operand.vmem [shape: f32[8,12], index: 2, kind: input, shape index: {}]
  %s3 = inlined_call_operand.<no memory space> [shape: f32[1], index: 3, kind: input, shape index: {}]
  %s4 = inlined_call_operand.hbm [shape: f32[2,4,256], index: 4, kind: output, shape index: {}]
  %s5 = sld [smem:[#allocation0]]
  $region49: #{tpu_custom_call.1} parent=0
    _
  %s7 = ssub.s32 1, %s5
  %s8 = scalar_select 0, %s7, %s5
  %9 = sst [smem:[#allocation2]] %s3
  $region1: #{tpu_custom_call.1} parent=0
    #allocation3 [shape = 'u8[8192]{0}', space=vmem, size = 0x2000, scoped, tag = 'output window, operand 0']
    #allocation4 [shape = 's32[2]{0}', space=sflag, size = 0x8, scoped, tag = 'scoped memory for tpu_custom_call.1']
    %10 = vsyncpa [#allocation4], 0
    %s11 = scalar_lea.sflag [#allocation4], 1
    %12 = vsyncpa %s11, 0
    loop: start=0, step=1, limit=4
    $region2: #{tpu_custom_call.1} parent=1 // loop_pre_header
      _
    $region3: #{tpu_custom_call.1} parent=1 // loop_header
      %s14 = sphi 0, %s18
      %p15 = scmp.ge.s32.totalorder %s14, 4
      %s21 = sphi 0, %s33
      %s22 = sphi 0, %s29
      %s23 = sphi 0, %s21
      %s24 = sphi 0, %s22
      %s25 = sphi 0, %s23
      %s26 = sphi 0, %s24
      %s38 = sphi 0, %s40
      %s41 = sphi 0, %s38
      %s42 = sphi 0, %s41
      %s58 = sphi 0, %s42
      %s66 = sphi 0, %s68
      %s69 = sphi 0, %s66
      %s70 = sphi 0, %s69
      %s86 = sphi 0, %s70
      %s90 = sphi 0, %s90
      %s92 = sphi 0, %s90
      %s93 = sphi 0, %s92
      %s107 = sphi 0, %s93
      %s111 = sphi 0, %s111
      %s113 = sphi 0, %s111
      %s114 = sphi 0, %s113
      %s128 = sphi 0, %s114
      %s136 = sphi 0, %s138
      %s139 = sphi 0, %s136
      %s140 = sphi 0, %s139
      %s156 = sphi 0, %s140
    $region4: #{tpu_custom_call.1} parent=1 // loop_header_branch
      %17 = sbr.rel (%p15) target = $region8
    $region5: #{tpu_custom_call.1} parent=1 // loop_body
      %s19 = ssub.s32 %s14, 1
      %s20 = ssub.s32 %s14, 2
      %s27 = sadd.s32 1, %s22
      %p28 = scmp.ge.s32.totalorder %s27, 1
      %s29 = scalar_select %p28, 0, %s27
      %s30 = sadd.s32 1, %s21
      %s31 = scalar_select %p28, %s30, %s21
      %p32 = scmp.ge.s32.totalorder %s31, 2
      %s33 = scalar_select %p32, 0, %s31
      %s34 = ssub.s32 %s21, %s33
      %s35 = ssub.s32 %s22, %s29
      %s36 = sor.u32 %s34, %s35
      %p37 = scmp.eq.s32.totalorder %s36, 0
      %s39 = sadd.s32 %s38, 1
      %s40 = scalar_select %p37, %s38, %s39
      %p43 = pneg %p37
      %p44 = scmp.eq.s32.totalorder %s14, 1
      %p45 = por %p43, %p44
      %p46 = scmp.ne.s32.totalorder %s38, %s41
      %p47 = scmp.eq.s32.totalorder %s14, 0
      %p48 = por %p46, %p47
      %p49 = scmp.ne.s32.totalorder %s38, %s41
      %p50 = scmp.eq.s32.totalorder %s19, 1
      %p51 = por %p49, %p50
      %p52 = scmp.ne.s32.totalorder %s41, %s42
      %p53 = scmp.eq.s32.totalorder %s19, 0
      %p54 = por %p52, %p53
      %p55 = scmp.ne.s32.totalorder %s41, %s42
      %p56 = scmp.eq.s32.totalorder %s20, 1
      %p57 = por %p55, %p56
      %p59 = scmp.ne.s32.totalorder %s42, %s58
      %p60 = scmp.eq.s32.totalorder %s20, 0
      %p61 = por %p59, %p60
      %s62 = ssub.s32 %s21, %s33
      %s63 = ssub.s32 %s22, %s29
      %s64 = sor.u32 %s62, %s63
      %p65 = scmp.eq.s32.totalorder %s64, 0
      %s67 = sadd.s32 %s66, 1
      %s68 = scalar_select %p65, %s66, %s67
      %p71 = pneg %p65
      %p72 = scmp.eq.s32.totalorder %s14, 1
      %p73 = por %p71, %p72
      %p74 = scmp.ne.s32.totalorder %s66, %s69
      %p75 = scmp.eq.s32.totalorder %s14, 0
      %p76 = por %p74, %p75
      %p77 = scmp.ne.s32.totalorder %s66, %s69
      %p78 = scmp.eq.s32.totalorder %s19, 1
      %p79 = por %p77, %p78
      %p80 = scmp.ne.s32.totalorder %s69, %s70
      %p81 = scmp.eq.s32.totalorder %s19, 0
      %p82 = por %p80, %p81
      %p83 = scmp.ne.s32.totalorder %s69, %s70
      %p84 = scmp.eq.s32.totalorder %s20, 1
      %p85 = por %p83, %p84
      %p87 = scmp.ne.s32.totalorder %s70, %s86
      %p88 = scmp.eq.s32.totalorder %s20, 0
      %p89 = por %p87, %p88
      %s91 = sadd.s32 %s90, 1
      %p94 = scmp.eq.s32.totalorder %s14, 1
      %p95 = scmp.ne.s32.totalorder %s90, %s92
      %p96 = scmp.eq.s32.totalorder %s14, 0
      %p97 = por %p95, %p96
      %p98 = scmp.ne.s32.totalorder %s90, %s92
      %p99 = scmp.eq.s32.totalorder %s19, 1
      %p100 = por %p98, %p99
      %p101 = scmp.ne.s32.totalorder %s92, %s93
      %p102 = scmp.eq.s32.totalorder %s19, 0
      %p103 = por %p101, %p102
      %p104 = scmp.ne.s32.totalorder %s92, %s93
      %p105 = scmp.eq.s32.totalorder %s20, 1
      %p106 = por %p104, %p105
      %p108 = scmp.ne.s32.totalorder %s93, %s107
      %p109 = scmp.eq.s32.totalorder %s20, 0
      %p110 = por %p108, %p109
      %s112 = sadd.s32 %s111, 1
      %p115 = scmp.eq.s32.totalorder %s14, 1
      %p116 = scmp.ne.s32.totalorder %s111, %s113
      %p117 = scmp.eq.s32.totalorder %s14, 0
      %p118 = por %p116, %p117
      %p119 = scmp.ne.s32.totalorder %s111, %s113
      %p120 = scmp.eq.s32.totalorder %s19, 1
      %p121 = por %p119, %p120
      %p122 = scmp.ne.s32.totalorder %s113, %s114
      %p123 = scmp.eq.s32.totalorder %s19, 0
      %p124 = por %p122, %p123
      %p125 = scmp.ne.s32.totalorder %s113, %s114
      %p126 = scmp.eq.s32.totalorder %s20, 1
      %p127 = por %p125, %p126
      %p129 = scmp.ne.s32.totalorder %s114, %s128
      %p130 = scmp.eq.s32.totalorder %s20, 0
      %p131 = por %p129, %p130
      %s132 = ssub.s32 %s21, %s33
      %s133 = ssub.s32 %s22, %s29
      %s134 = sor.u32 %s132, %s133
      %p135 = scmp.eq.s32.totalorder %s134, 0
      %s137 = sadd.s32 %s136, 1
      %s138 = scalar_select %p135, %s136, %s137
      %p141 = pneg %p135
      %p142 = scmp.eq.s32.totalorder %s14, 1
      %p143 = por %p141, %p142
      %p144 = scmp.ne.s32.totalorder %s136, %s139
      %p145 = scmp.eq.s32.totalorder %s14, 0
      %p146 = por %p144, %p145
      %p147 = scmp.ne.s32.totalorder %s136, %s139
      %p148 = scmp.eq.s32.totalorder %s19, 1
      %p149 = por %p147, %p148
      %p150 = scmp.ne.s32.totalorder %s139, %s140
      %p151 = scmp.eq.s32.totalorder %s19, 0
      %p152 = por %p150, %p151
      %p153 = scmp.ne.s32.totalorder %s139, %s140
      %p154 = scmp.eq.s32.totalorder %s20, 1
      %p155 = por %p153, %p154
      %p157 = scmp.ne.s32.totalorder %s140, %s156
      %p158 = scmp.eq.s32.totalorder %s20, 0
      %p159 = por %p157, %p158
      %p160 = scmp.le.s32.totalorder 1, %s14
      %p161 = scmp.lt.s32.totalorder %s14, 3
      %p162 = pnand %p160, %p161
      %p163 = pneg %p162
      // Predicated region
      $region9: #{tpu_custom_call.1} parent=5 // pred_check
        _
      $region10: #{tpu_custom_call.1} parent=5 // pred_check_branch
        %165 = sbr.rel (%p162) target = $region12
      $region11: #{tpu_custom_call.1} parent=5 // pred_region
        %s166 = ssub.s32 %s14, 1
        // Predicated region
        $region13: #{tpu_custom_call.1} parent=11 // pred_check
          %p167 = pneg %p103
        $region14: #{tpu_custom_call.1} parent=11 // pred_check_branch
          %169 = sbr.rel (%p167) target = $region16
        $region15: #{tpu_custom_call.1} parent=11 // pred_region
          _
        $region16: #{tpu_custom_call.1} parent=11 // pred_fallthru
          _
        // Predicated region
        $region17: #{tpu_custom_call.1} parent=11 // pred_check
          %p170 = pneg %p124
        $region18: #{tpu_custom_call.1} parent=11 // pred_check_branch
          %172 = sbr.rel (%p170) target = $region20
        $region19: #{tpu_custom_call.1} parent=11 // pred_region
          _
        $region20: #{tpu_custom_call.1} parent=11 // pred_fallthru
          _
      $region12: #{tpu_custom_call.1} parent=5 // pred_fallthru
        _
      %p173 = scmp.lt.s32.totalorder %s14, 2
      // Predicated region
      $region21: #{tpu_custom_call.1} parent=5 // pred_check
        %p174 = pneg %p173
      $region22: #{tpu_custom_call.1} parent=5 // pred_check_branch
        %176 = sbr.rel (%p174) target = $region24
      $region23: #{tpu_custom_call.1} parent=5 // pred_region
        // Predicated region
        $region25: #{tpu_custom_call.1} parent=23 // pred_check
          %p177 = pneg %p48
        $region26: #{tpu_custom_call.1} parent=23 // pred_check_branch
          %179 = sbr.rel (%p177) target = $region28
        $region27: #{tpu_custom_call.1} parent=23 // pred_region
          %s180 = smul.u32 2, %s22
          %p181 = scmp.lt.s32.totalorder %s21, 1
          %s182 = scalar_select %p181, %s21, 1
          %p183 = scmp.lt.s32.totalorder %s180, 1
          %s184 = scalar_select %p183, %s180, 1
          %s185 = smul.addr %s182, 2
          %s186 = sadd.s32 %s184, %s185
          %s187 = smul.addr %s186, 8
          %s188 = scalar_lea.vmem %s0, %s187
          %s189 = smul.u32 2, %s22
        $region28: #{tpu_custom_call.1} parent=23 // pred_fallthru
          _
        // Predicated region
        $region29: #{tpu_custom_call.1} parent=23 // pred_check
          %p190 = pneg %p76
        $region30: #{tpu_custom_call.1} parent=23 // pred_check_branch
          %192 = sbr.rel (%p190) target = $region32
        $region31: #{tpu_custom_call.1} parent=23 // pred_region
          %s193 = smul.u32 2, %s22
          %p194 = scmp.lt.s32.totalorder %s21, 1
          %s195 = scalar_select %p194, %s21, 1
          %p196 = scmp.lt.s32.totalorder %s193, 1
          %s197 = scalar_select %p196, %s193, 1
          %s198 = smul.addr %s195, 2
          %s199 = sadd.s32 %s197, %s198
          %s200 = smul.addr %s199, 4
          %s201 = scalar_lea.vmem %s1, %s200
          %s202 = smul.u32 2, %s22
        $region32: #{tpu_custom_call.1} parent=23 // pred_fallthru
          _
      $region24: #{tpu_custom_call.1} parent=5 // pred_fallthru
        _
      %p203 = scmp.le.s32.totalorder 1, %s14
      %p204 = scmp.lt.s32.totalorder %s14, 3
      %p205 = pnand %p203, %p204
      %p206 = pneg %p205
      // Predicated region
      $region33: #{tpu_custom_call.1} parent=5 // pred_check
        _
      $region34: #{tpu_custom_call.1} parent=5 // pred_check_branch
        %208 = sbr.rel (%p205) target = $region36
      $region35: #{tpu_custom_call.1} parent=5 // pred_region
        %s209 = ssub.s32 %s14, 1
        %s210 = smul.u32 2, %s24
        %p211 = scmp.lt.s32.totalorder %s23, 1
        %s212 = scalar_select %p211, %s23, 1
        %p213 = scmp.lt.s32.totalorder %s210, 1
        %s214 = scalar_select %p213, %s210, 1
        %s215 = smul.addr %s212, 2
        %s216 = sadd.s32 %s214, %s215
        %s217 = smul.addr %s216, 8
        %s218 = scalar_lea.vmem %s0, %s217
        %p219 = pneg %p54
        %p220 = pneg %p51
        %s221 = smul.u32 2, %s24
        %p222 = scmp.lt.s32.totalorder %s23, 1
        %s223 = scalar_select %p222, %s23, 1
        %p224 = scmp.lt.s32.totalorder %s221, 1
        %s225 = scalar_select %p224, %s221, 1
        %s226 = smul.addr %s223, 2
        %s227 = sadd.s32 %s225, %s226
        %s228 = smul.addr %s227, 4
        %s229 = scalar_lea.vmem %s1, %s228
        %p230 = pneg %p82
        %p231 = pneg %p79
        %p232 = pneg %p103
        %p233 = pneg %p100
        %p234 = pneg %p124
        %p235 = pneg %p121
        %p236 = pneg %p152
        %p237 = pneg %p149
        %s238 = sand.u32 %s139, 1
        %s239 = scalar_lea.sflag [#allocation4], %s238
        %s240 = sand.u32 %s139, 1
        %s241 = smul.addr %s240, 8
        %s242 = scalar_lea.vmem [#allocation3], %s241
        %s243 = smul.u32 2, %s24
        %p244 = scmp.lt.s32.totalorder %s23, 1
        %s245 = scalar_select %p244, %s23, 1
        %p246 = scmp.lt.s32.totalorder %s243, 1
        %s247 = scalar_select %p246, %s243, 1
        %s248 = smul.addr %s245, 2
        %s249 = sadd.s32 %s247, %s248
        %s250 = smul.addr %s249, 8
        %s251 = scalar_lea.vmem %s0, %s250
        %s252 = smul.u32 2, %s24
        %s253 = smul.u32 2, %s24
        %p254 = scmp.lt.s32.totalorder %s23, 1
        %s255 = scalar_select %p254, %s23, 1
        %p256 = scmp.lt.s32.totalorder %s253, 1
        %s257 = scalar_select %p256, %s253, 1
        %s258 = smul.addr %s255, 2
        %s259 = sadd.s32 %s257, %s258
        %s260 = smul.addr %s259, 4
        %s261 = scalar_lea.vmem %s1, %s260
        %s262 = smul.u32 2, %s24
        %s263 = smul.u32 2, %s24
        %v264 = vld [vmem:[%s2] sm:$0xff]
        %s265 = sld [smem:[#allocation2]]
        %v266 = vld [vmem:[%s251] sm:$0x3f]
        %v267 = vld [vmem:[%s251 + $0x8] sm:$0x3f]
        %v268 = vld [vmem:[%s261] sm:$0xff]
        %270 = vset.pattern.permute.xlu0 0
        %271 = vperm.xlu0 %270, %v264
        %v272 = vpop.permute.xlu0 %271
        %v274 = vperm.slane %v266, 0
        %v275 = vperm.slane %v267, 0
        %v276 = vmul.f32 %v272, %v274
        %v277 = vmul.f32 %v272, %v275
        %278 = vset.pattern.permute.xlu0 10
        %279 = vperm.xlu0 %278, %v264
        %v280 = vpop.permute.xlu0 %279
        %v282 = vadd.f32 %v280, %v276
        %v283 = vadd.f32 %v280, %v277
        %284 = vset.pattern.permute.xlu0 1
        %285 = vperm.xlu0 %284, %v264
        %v286 = vpop.permute.xlu0 %285
        %v288 = vperm.slane %v266, 1
        %v289 = vperm.slane %v267, 1
        %v290 = vmul.f32 %v286, %v288
        %v291 = vmul.f32 %v286, %v289
        %v292 = vadd.f32 %v282, %v290
        %v293 = vadd.f32 %v283, %v291
        %294 = vset.pattern.permute.xlu0 2
        %295 = vperm.xlu0 %294, %v264
        %v296 = vpop.permute.xlu0 %295
        %v298 = vperm.slane %v266, 2
        %v299 = vperm.slane %v267, 2
        %v300 = vmul.f32 %v296, %v298
        %v301 = vmul.f32 %v296, %v299
        %v302 = vadd.f32 %v292, %v300
        %v303 = vadd.f32 %v293, %v301
        %304 = vset.pattern.permute.xlu0 3
        %305 = vperm.xlu0 %304, %v264
        %v306 = vpop.permute.xlu0 %305
        %v308 = vperm.slane %v266, 3
        %v309 = vperm.slane %v267, 3
        %v310 = vmul.f32 %v306, %v308
        %v311 = vmul.f32 %v306, %v309
        %v312 = vadd.f32 %v302, %v310
        %v313 = vadd.f32 %v303, %v311
        %314 = vset.pattern.permute.xlu0 4
        %315 = vperm.xlu0 %314, %v264
        %v316 = vpop.permute.xlu0 %315
        %v318 = vperm.slane %v266, 4
        %v319 = vperm.slane %v267, 4
        %v320 = vmul.f32 %v316, %v318
        %v321 = vmul.f32 %v316, %v319
        %v322 = vadd.f32 %v312, %v320
        %v323 = vadd.f32 %v313, %v321
        %324 = vset.pattern.permute.xlu0 5
        %325 = vperm.xlu0 %324, %v264
        %v326 = vpop.permute.xlu0 %325
        %v328 = vperm.slane %v266, 5
        %v329 = vperm.slane %v267, 5
        %v330 = vmul.f32 %v326, %v328
        %v331 = vmul.f32 %v326, %v329
        %v332 = vadd.f32 %v322, %v330
        %v333 = vadd.f32 %v323, %v331
        %334 = vset.pattern.permute.xlu0 6
        %335 = vperm.xlu0 %334, %v264
        %v336 = vpop.permute.xlu0 %335
        %v339 = vperm.slane %v268, 0
        %v340 = vperm.slane %v268, 4
        %v343 = vperm.slane %v339, 0
        %v344 = vperm.slane %v340, 0
        %v345 = vmul.f32 %v336, %v343
        %v346 = vmul.f32 %v336, %v344
        %v347 = vadd.f32 %v332, %v345
        %v348 = vadd.f32 %v333, %v346
        %349 = vset.pattern.permute.xlu0 7
        %350 = vperm.xlu0 %349, %v264
        %v351 = vpop.permute.xlu0 %350
        %v353 = vperm.slane %v268, 1
        %v354 = vperm.slane %v268, 5
        %v357 = vperm.slane %v353, 1
        %v358 = vperm.slane %v354, 1
        %v359 = vmul.f32 %v351, %v357
        %v360 = vmul.f32 %v351, %v358
        %v361 = vadd.f32 %v347, %v359
        %v362 = vadd.f32 %v348, %v360
        %363 = vset.pattern.permute.xlu0 8
        %364 = vperm.xlu0 %363, %v264
        %v365 = vpop.permute.xlu0 %364
        %v367 = vperm.slane %v268, 2
        %v368 = vperm.slane %v268, 6
        %v371 = vperm.slane %v367, 2
        %v372 = vperm.slane %v368, 2
        %v373 = vmul.f32 %v365, %v371
        %v374 = vmul.f32 %v365, %v372
        %v375 = vadd.f32 %v361, %v373
        %v376 = vadd.f32 %v362, %v374
        %377 = vset.pattern.permute.xlu0 9
        %378 = vperm.xlu0 %377, %v264
        %v379 = vpop.permute.xlu0 %378
        %v381 = vperm.slane %v268, 3
        %v382 = vperm.slane %v268, 7
        %v385 = vperm.slane %v381, 3
        %v386 = vperm.slane %v382, 3
        %v387 = vmul.f32 %v379, %v385
        %v388 = vmul.f32 %v379, %v386
        %v389 = vadd.f32 %v375, %v387
        %v390 = vadd.f32 %v376, %v388
        %v391 = vmax.f32 %v389, 0.0
        %v392 = vmax.f32 %v390, 0.0
        %393 = vset.pattern.permute.xlu0 11
        %394 = vperm.xlu0 %393, %v264
        %v395 = vpop.permute.xlu0 %394
        %v397 = vmul.f32 %v395, %v391
        %v398 = vmul.f32 %v395, %v392
        %v399 = vrot.slane %v397, 4
        %v400 = vadd.f32 %v397, %v399
        %v401 = vrot.slane %v400, 2
        %v402 = vadd.f32 %v400, %v401
        %v403 = vrot.slane %v402, 1
        %v404 = vadd.f32 %v402, %v403
        %v405 = vrot.slane %v398, 4
        %v406 = vadd.f32 %v398, %v405
        %v407 = vrot.slane %v406, 2
        %v408 = vadd.f32 %v406, %v407
        %v409 = vrot.slane %v408, 1
        %v410 = vadd.f32 %v408, %v409
        %v411 = vstv %s265
        %v412 = vadd.f32 %v404, %v411
        %v413 = vadd.f32 %v410, %v411
        %v414 = vsub.f32 0.0, %v412
        %v415 = vsub.f32 0.0, %v413
        %v416 = vmul.f32 %v414, 1.442695
        %v417 = vpow.pop %v416
        %v418 = vmul.f32 %v415, 1.442695
        %v419 = vpow.pop %v418
        %v420 = vadd.f32 %v417, 1.0
        %v421 = vadd.f32 %v419, 1.0
        %v422 = vrcp.pop %v420
        %v423 = vmul.f32 %v420, %v422
        %v424 = vsub.f32 1.0, %v423
        %v425 = vmul.f32 %v422, %v424
        %v426 = vadd.f32 %v422, %v425
        %vm427 = vweird.f32 %v420
        %vm428 = vweird.f32 %v422
        %vm429 = vmor %vm427, %vm428
        %v430 = vsel %vm429, %v422, %v426
        %v431 = vand.u32 2147483647, %v420
        %vm432 = vcmp.eq.f32.partialorder %v431, 8.507059e+37
        %v433 = vand.u32 %v420, 2147483648
        %v434 = vor.u32 1.1754944e-38, %v433
        %v435 = vsel %vm432, %v434, %v430
        %v436 = vrcp.pop %v421
        %v437 = vmul.f32 %v421, %v436
        %v438 = vsub.f32 1.0, %v437
        %v439 = vmul.f32 %v436, %v438
        %v440 = vadd.f32 %v436, %v439
        %vm441 = vweird.f32 %v421
        %vm442 = vweird.f32 %v436
        %vm443 = vmor %vm441, %vm442
        %v444 = vsel %vm443, %v436, %v440
        %v445 = vand.u32 2147483647, %v421
        %vm446 = vcmp.eq.f32.partialorder %v445, 8.507059e+37
        %v447 = vand.u32 %v421, 2147483648
        %v448 = vor.u32 1.1754944e-38, %v447
        %v449 = vsel %vm446, %v448, %v444
        %v452 = vrot.slane %v449, 4
        %vm453 = vcmask 1043456
        %v454 = vsel %vm453, %v435, %v452
        %v456 = vmul.f32 %v268, %v454
        %457 = vst [vmem:[%s242] sm:$0xff] %v456
        %s458 = sand.u32 %s139, 1
        %s459 = scalar_lea.sflag [#allocation4], %s458
        %s460 = sand.u32 %s139, 1
        %s461 = smul.addr %s460, 8
        %s462 = scalar_lea.vmem [#allocation3], %s461
        // Predicated region
        $region37: #{tpu_custom_call.1} parent=35 // pred_check
          %p463 = pneg %p149
        $region38: #{tpu_custom_call.1} parent=35 // pred_check_branch
          %465 = sbr.rel (%p463) target = $region40
        $region39: #{tpu_custom_call.1} parent=35 // pred_region
          %s466 = smul.u32 2, %s24
          %468 = vsyncadd %s459, 0
          %s469 = smul.addr %s23, 2
          %s470 = sadd.s32 %s466, %s469
          %s471 = smul.addr %s470, 4
          %s472 = scalar_lea.hbm %s4, %s471
          %s474 = sshll.u32 %s462, 4
          %s475 = int_to_ptr.vmem [resolvable:$true] %s474
          %s476 = sshll.u32 %s472, 4
          %s477 = int_to_ptr.hbm [resolvable:$true] %s476
          %479 = dma.vmem_to_hbm [thread:$0]  %s475, 128, %s477, %s459
        $region40: #{tpu_custom_call.1} parent=35 // pred_fallthru
          _
      $region36: #{tpu_custom_call.1} parent=5 // pred_fallthru
        _
      %p480 = scmp.le.s32.totalorder 2, %s14
      // Predicated region
      $region41: #{tpu_custom_call.1} parent=5 // pred_check
        %p481 = pneg %p480
      $region42: #{tpu_custom_call.1} parent=5 // pred_check_branch
        %483 = sbr.rel (%p481) target = $region44
      $region43: #{tpu_custom_call.1} parent=5 // pred_region
        %s484 = ssub.s32 %s14, 2
        // Predicated region
        $region45: #{tpu_custom_call.1} parent=43 // pred_check
          %p485 = pneg %p155
        $region46: #{tpu_custom_call.1} parent=43 // pred_check_branch
          %487 = sbr.rel (%p485) target = $region48
        $region47: #{tpu_custom_call.1} parent=43 // pred_region
          %s488 = sand.u32 %s140, 1
          %s489 = scalar_lea.sflag [#allocation4], %s488
          %s490 = sand.u32 %s140, 1
          %s491 = smul.addr %s490, 8
          %s492 = scalar_lea.vmem [#allocation3], %s491
          %494 = dma.done %s489, 128
        $region48: #{tpu_custom_call.1} parent=43 // pred_fallthru
          _
      $region44: #{tpu_custom_call.1} parent=5 // pred_fallthru
        _
    $region6: #{tpu_custom_call.1} parent=1 // loop_footer
      %s18 = sadd.s32 1, %s14
    $region7: #{tpu_custom_call.1} parent=1 // loop_footer_branch
      %13 = sbr.rel target = $region3
    $region8: #{tpu_custom_call.1} parent=1 // loop_exit
      _
    %495 = vsyncpa [#allocation4], 1
    %s496 = scalar_lea.sflag [#allocation4], 1
    %497 = vsyncpa %s496, 1

</llo_original>
